<compile_context>
chip_gen: v6e
topology: v6e:2x2x1
jax: 0.10.0
libtpu: 0.0.40
codegen_flags: <defaults>
</compile_context>

<pallas_src>
import jax
import jax.numpy as jnp
from jax.experimental import pallas as pl
from jax.experimental.pallas import tpu as pltpu


# ---------------------------------------------------------------------------
# Kernel
# ---------------------------------------------------------------------------
def attention_gcn_kernel(x_ref, adj_ref, waug_ref, baug_ref, a2_ref, out_ref,
                         h_scr, sj_scr):
    """grid = (batch groups ["parallel"], row tiles ["arbitrary"]).

    The row-tile axis MUST stay the innermost grid axis: h_scr / sj_scr are
    (re)computed at ti == 0 and carried across the row tiles of one batch group."""
    ti = pl.program_id(1)
    G = x_ref.shape[0]                  # batches packed into this grid step (<= 8)
    TI = adj_ref.shape[1]               # attention row tile
    F_out = h_scr.shape[2]

    # ---- once per batch group: h = fc(x) and the per-node key score ----------
    @pl.when(ti == 0)
    def _():
        w_aug = waug_ref[...]            # (F_in, F_out + 1)
        b_aug = baug_ref[...]            # (1,    F_out + 1), f32
        for g in range(G):               # bounded static unroll (G <= 8)
            s = jnp.dot(x_ref[g], w_aug,
                        preferred_element_type=jnp.float32) + b_aug      # (N, F_out + 1)
            h_scr[g] = s[:, :F_out].astype(h_scr.dtype)                   # h = fc(x)
            sj_scr[g] = s[:, F_out:F_out + 1].T                           # w1·h[j] + a_b, lane-dense

    # ---- per row tile ---------------------------------------------------------
    row0 = pl.multiple_of(ti * TI, TI)
    a2 = a2_ref[...]                                                      # (F_out, 1): w2
    outs = []
    for g in range(G):
        h = h_scr[g]                                                      # (N, F_out)
        h_tile = h_scr[g, pl.ds(row0, TI), :]                             # (TI, F_out)
        # Query score recomputed from cached h (tiny matmul) instead of a lane-padded
        # (N, 1) column scratch: no masked sub-width loads on the hot path.
        si = jnp.dot(h_tile, a2, preferred_element_type=jnp.float32)      # (TI, 1): w2·h[i]
        # TODO(synk): bf16 tanh/exp on v6e/v7x (EUP) once accuracy budget allows.
        e = jnp.tanh(si + sj_scr[g])                                      # (TI, N) broadcast add
        logits = adj_ref[g].astype(jnp.float32) + e
        m = jnp.max(logits, axis=-1, keepdims=True)
        p = jnp.exp(logits - m)                                           # unnormalized probs
        acc = jnp.dot(p.astype(h.dtype), h,
                      preferred_element_type=jnp.float32)                 # (TI, F_out)
        # Deferred softmax normalization: divide the (TI, F_out) result, not the (TI, N) tile.
        inv = 1.0 / jnp.sum(p, axis=-1, keepdims=True)
        outs.append(acc * inv)
    # One lane-dense (TI, G*F_out) store instead of G masked partial stores.
    out_ref[0] = jnp.concatenate(outs, axis=-1).astype(out_ref.dtype)


# ---------------------------------------------------------------------------
# Planning helpers (generation-aware tiling / VMEM budgeting)
# ---------------------------------------------------------------------------
def _round_up(a: int, m: int) -> int:
    return (a + m - 1) // m * m


def _largest_divisor_leq(n: int, cap: int) -> int:
    cap = max(1, min(cap, n))
    for d in range(cap, 0, -1):
        if n % d == 0:
            return d
    return 1


def _tpu_vmem_bytes() -> int:
    try:
        return int(pltpu.get_tpu_info().vmem_capacity_bytes)
    except Exception:
        return 64 << 20        # conservative (v7x-sized) fallback


def _tensorcores_per_chip() -> int:
    try:
        kind = jax.devices()[0].device_kind.lower()
    except Exception:
        return 1
    # v7x: 2 TensorCores/chip; v4 / v5p megacore also shards "parallel" grid axes
    # across 2 cores.  v5e / v6e are single-core.
    return 2 if ("v7" in kind or "v4" in kind or "v5p" in kind) else 1


def _plan(B, N, F_in, F_out, x_dtype, adj_dtype, out_dtype):
    """Pick (G batches / grid step, row tile TI, padded node count, vmem limit)."""
    xb = jnp.dtype(x_dtype).itemsize
    ab = jnp.dtype(adj_dtype).itemsize
    ob = jnp.dtype(out_dtype).itemsize

    phys = _tpu_vmem_bytes()                                # 128 MiB v5e/v6e, 64 MiB v7x
    budget = min(max(int(phys * 0.45), 16 << 20), 56 << 20)

    lane = lambda c: _round_up(c, 128)                      # VMEM lane padding
    n8 = _round_up(N, 8)

    # G batches packed per grid step -> lane-dense (TI, G*F_out) output stores;
    # static unroll bounded at 8.
    G = _largest_divisor_leq(B, min(max(1, 128 // max(F_out, 1)), 8))
    # Keep >= 2 steps on the "parallel" batch axis when the chip has 2 TensorCores.
    if _tensorcores_per_chip() >= 2 and B >= 2 and B // G < 2:
        G = _largest_divisor_leq(B, B // 2)

    def fixed_bytes(g):                                     # TI-independent footprint
        return (2 * g * n8 * lane(F_in) * xb                # double-buffered x block
                + g * n8 * lane(F_out) * xb                 # h scratch
                + g * 8 * lane(n8) * 4                      # sj scratch (f32)
                + (1 << 20))                                # weights + slack

    while G > 1 and fixed_bytes(G) > budget // 2:
        G = _largest_divisor_leq(B, G - 1)

    # Per-row-of-TI cost: double-buffered adj + out blocks, plus ~3 f32 (TI, N)
    # softmax temporaries (logits / p) that live in compiler-managed VMEM.
    per_row = 2 * G * lane(n8) * ab + 2 * lane(G * F_out) * ob + 3 * lane(n8) * 4
    ti_cap = (budget - fixed_bytes(G)) // max(per_row, 1)
    ti_cap = max(8, min(ti_cap, 512) // 8 * 8)              # throughput plateaus ~512 rows

    if n8 <= ti_cap:
        TI, N_pad = n8, n8
    else:
        nt = -(-n8 // ti_cap)
        TI = _round_up(-(-N // nt), 8)
        N_pad = nt * TI

    est = (fixed_bytes(G)
           + 2 * G * TI * lane(N_pad) * ab                  # adj block (double-buffered)
           + 2 * TI * lane(G * F_out) * ob                  # out block (double-buffered)
           + 3 * TI * lane(N_pad) * 4)                      # f32 softmax temporaries
    vmem_limit = int(min(phys * 3 // 4, max(est + (8 << 20), 32 << 20)))
    vmem_limit = max(vmem_limit, est + (4 << 20))
    return G, TI, N_pad, vmem_limit


# ---------------------------------------------------------------------------
# Wrapper
# ---------------------------------------------------------------------------
def attention_gcn(x, adj, w_fc, b_fc, a_w, a_b, *, compute_dtype=None):
    """x: (B, N, F_in), adj: (B, N, N), w_fc: (F_out, F_in), b_fc: (F_out,),
       a_w: (1, 2*F_out), a_b: (1,).

    compute_dtype=jnp.bfloat16 streams adj / runs the MXU path in bf16 (halves the
    dominant HBM stream on v5e/v6e); softmax statistics stay f32.  Default (None)
    keeps the full-f32 data path (matches the reference to ~1e-6)."""
    B, N, F_in = x.shape
    F_out = w_fc.shape[0]
    out_dtype = x.dtype

    if compute_dtype is not None:
        x = x.astype(compute_dtype)
        adj = adj.astype(compute_dtype)

    # Fold the attention projection into the FC weights (one MXU pass in-kernel):
    #   cols 0..F_out-1 : W_fc^T        -> h = fc(x)
    #   col  F_out      : W_fc^T @ w1   -> w1·h[j]  (key score; a_b folded into its bias)
    # The query score w2·h[i] is recomputed per row tile from h.
    wfc_t = jnp.transpose(w_fc).astype(jnp.float32)                  # (F_in, F_out)
    aw1 = a_w[0, :F_out].astype(jnp.float32)                         # multiplies h[b, j]
    aw2 = a_w[0, F_out:].astype(jnp.float32)                         # multiplies h[b, i]
    w_aug = jnp.concatenate([wfc_t, (wfc_t @ aw1)[:, None]], axis=1)  # (F_in, F_out + 1)
    b32 = b_fc.astype(jnp.float32)
    b_aug = jnp.concatenate(
        [b32, (jnp.dot(b32, aw1) + a_b.astype(jnp.float32)[0])[None]]
    ).reshape(1, F_out + 1)
    w_aug = w_aug.astype(x.dtype)
    a2 = aw2.reshape(F_out, 1).astype(x.dtype)

    G, TI, N_pad, vmem_limit = _plan(B, N, F_in, F_out, x.dtype, adj.dtype, out_dtype)
    assert B % G == 0 and N_pad % TI == 0

    if N_pad != N:
        # Pad the node axis so TI divides it.  Padded *keys* get adj = -1e9 (softmax
        # weight exactly 0); padded *query* rows produce garbage sliced off below.
        x = jnp.pad(x, ((0, 0), (0, N_pad - N), (0, 0)))
        adj = jnp.pad(adj, ((0, 0), (0, N_pad - N), (0, 0)))
        adj = jnp.pad(adj, ((0, 0), (0, 0), (0, N_pad - N)), constant_values=-1e9)

    grid = (B // G, N_pad // TI)

    cost = pl.CostEstimate(
        flops=2 * B * N * N * F_out + 2 * B * N * F_in * (F_out + 1),
        transcendentals=2 * B * N * N,                       # tanh + exp per adj element
        bytes_accessed=int(adj.size * adj.dtype.itemsize + x.size * x.dtype.itemsize
                           + B * N_pad * F_out * jnp.dtype(out_dtype).itemsize))

    out_packed = pl.pallas_call(
        attention_gcn_kernel,
        out_shape=jax.ShapeDtypeStruct((B // G, N_pad, G * F_out), out_dtype),
        grid_spec=pltpu.PrefetchScalarGridSpec(
            num_scalar_prefetch=0,
            grid=grid,
            in_specs=[
                pl.BlockSpec((G, N_pad, F_in), lambda bi, ti: (bi, 0, 0)),
                pl.BlockSpec((G, TI, N_pad), lambda bi, ti: (bi, ti, 0)),
                pl.BlockSpec((F_in, F_out + 1), lambda bi, ti: (0, 0)),
                pl.BlockSpec((1, F_out + 1), lambda bi, ti: (0, 0)),
                pl.BlockSpec((F_out, 1), lambda bi, ti: (0, 0)),
            ],
            out_specs=pl.BlockSpec((1, TI, G * F_out), lambda bi, ti: (bi, ti, 0)),
            scratch_shapes=[
                pltpu.VMEM((G, N_pad, F_out), x.dtype),    # h = fc(x), reused across row tiles
                pltpu.VMEM((G, 1, N_pad), jnp.float32),    # w1·h[j] + a_b, lane-dense key scores
            ],
        ),
        # Batch-group axis is independent ("parallel", megacore-shardable); the row-tile
        # axis carries the h/sj scratch and must stay innermost ("arbitrary").
        compiler_params=pltpu.CompilerParams(
            dimension_semantics=("parallel", "arbitrary"),
            vmem_limit_bytes=vmem_limit),
        cost_estimate=cost,
    )(x, adj, w_aug, b_aug, a2)

    # Un-pack the lane-packed batches: (B//G, N_pad, G*F_out) -> (B, N, F_out).
    out = out_packed.reshape(B // G, N_pad, G, F_out).transpose(0, 2, 1, 3)
    return out.reshape(B, N_pad, F_out)[:, :N, :]


# ---------------------------------------------------------------------------
# Pure-JAX reference of the intended forward (explicit (B, N, N, 2F) concat)
# ---------------------------------------------------------------------------
def reference(x, adj, w_fc, b_fc, a_w, a_b):
    h = jnp.einsum("bnf,of->bno", x, w_fc) + b_fc
    B, N, F_out = h.shape
    xj = jnp.broadcast_to(h[:, None, :, :], (B, N, N, F_out))   # h[b, j]
    xi = jnp.broadcast_to(h[:, :, None, :], (B, N, N, F_out))   # h[b, i]
    a_in = jnp.concatenate([xj, xi], axis=-1)                   # (B, N, N, 2F)
    e = jnp.tanh(jnp.einsum("bijk,ok->bijo", a_in, a_w)[..., 0] + a_b[0])
    att = jax.nn.softmax(adj + e, axis=-1)
    return jnp.einsum("bij,bjf->bif", att, h)


if __name__ == "__main__":
    B, N, F_in, F_out = 2, 8, 16, 32

    key = jax.random.PRNGKey(0)
    ks = jax.random.split(key, 6)
    x = jax.random.normal(ks[0], (B, N, F_in), jnp.float32)
    adj = jax.random.normal(ks[1], (B, N, N), jnp.float32)
    w_fc = jax.random.normal(ks[2], (F_out, F_in), jnp.float32) / jnp.sqrt(F_in)
    b_fc = jax.random.normal(ks[3], (F_out,), jnp.float32) * 0.1
    a_w = jax.random.normal(ks[4], (1, 2 * F_out), jnp.float32) / jnp.sqrt(2.0 * F_out)
    a_b = jax.random.normal(ks[5], (1,), jnp.float32) * 0.1

    ref = reference(x, adj, w_fc, b_fc, a_w, a_b)

    # Default full-f32 path: must match the reference tightly.
    out = attention_gcn(x, adj, w_fc, b_fc, a_w, a_b)
    jax.block_until_ready(out)
    assert out.shape == (B, N, F_out)
    assert jnp.allclose(out, ref, atol=1e-4, rtol=1e-4), "mismatch vs reference (f32 path)"

    # Opt-in bf16 streamed/MXU data path (halves the dominant adj HBM stream on
    # v5e/v6e).  Looser tolerance: adj/x/h carry bf16 rounding the reference does not.
    out_fast = attention_gcn(x, adj, w_fc, b_fc, a_w, a_b, compute_dtype=jnp.bfloat16)
    jax.block_until_ready(out_fast)
    assert jnp.allclose(out_fast, ref, atol=1e-1, rtol=1e-1), "mismatch vs reference (bf16 path)"

    print("KERNEL_OK")
</pallas_src>

<mosaic_0001>
module attributes {stable_mosaic.version = 11 : i64} {
  func.func @attention_gcn_kernel(%arg0: i32, %arg1: i32, %arg2: memref<2x8x16xf32, #tpu.memory_space<vmem>>, %arg3: memref<2x8x8xf32, #tpu.memory_space<vmem>>, %arg4: memref<16x33xf32, #tpu.memory_space<vmem>>, %arg5: memref<1x33xf32, #tpu.memory_space<vmem>>, %arg6: memref<32x1xf32, #tpu.memory_space<vmem>>, %arg7: memref<1x8x64xf32, #tpu.memory_space<vmem>>, %arg8: memref<2x8x32xf32, #tpu.memory_space<vmem>>, %arg9: memref<2x1x8xf32, #tpu.memory_space<vmem>>) attributes {dimension_semantics = [#tpu.dimension_semantics<parallel>, #tpu.dimension_semantics<arbitrary>], iteration_bounds = array<i64: 1, 1>, scalar_prefetch = 0 : i64, scratch_operands = 2 : i64, tpu.core_type = #tpu.core_type<tc>, window_params = [{transform_indices = @transform_0, window_bounds = array<i64: 2, 8, 16>}, {transform_indices = @transform_1, window_bounds = array<i64: 2, 8, 8>}, {pipeline_mode = #tpu.pipeline_mode<synchronous>, transform_indices = @transform_2, window_bounds = array<i64: 16, 33>}, {pipeline_mode = #tpu.pipeline_mode<synchronous>, transform_indices = @transform_3, window_bounds = array<i64: 1, 33>}, {pipeline_mode = #tpu.pipeline_mode<synchronous>, transform_indices = @transform_4, window_bounds = array<i64: 32, 1>}, {transform_indices = @transform_5, window_bounds = array<i64: 1, 8, 64>}]} {
    %c0_i32 = arith.constant 0 : i32
    %0 = arith.cmpi eq, %arg1, %c0_i32 : i32
    %1 = arith.extui %0 : i1 to i32
    %c0_i32_0 = arith.constant 0 : i32
    %2 = arith.cmpi ne, %1, %c0_i32_0 : i32
    scf.if %2 {
      %c0_35 = arith.constant 0 : index
      %c0_36 = arith.constant 0 : index
      %64 = vector.load %arg4[%c0_35, %c0_36] : memref<16x33xf32, #tpu.memory_space<vmem>>, vector<16x33xf32>
      %c0_37 = arith.constant 0 : index
      %c0_38 = arith.constant 0 : index
      %65 = vector.load %arg5[%c0_37, %c0_38] : memref<1x33xf32, #tpu.memory_space<vmem>>, vector<1x33xf32>
      %c0_39 = arith.constant 0 : index
      %c0_40 = arith.constant 0 : index
      %c0_41 = arith.constant 0 : index
      %66 = vector.load %arg2[%c0_39, %c0_40, %c0_41] : memref<2x8x16xf32, #tpu.memory_space<vmem>>, vector<1x8x16xf32>
      %67 = vector.shape_cast %66 : vector<1x8x16xf32> to vector<8x16xf32>
      %cst_42 = arith.constant dense<0.000000e+00> : vector<8x33xf32>
      %68 = tpu.matmul %67, %64, %cst_42 {dimension_numbers = #tpu.dot_dimension_numbers<[1], [0], [0], [1], [0, 0, 1, 1], [], []>} : vector<8x16xf32>, vector<16x33xf32>, vector<8x33xf32> -> vector<8x33xf32>
      %69 = vector.broadcast %65 : vector<1x33xf32> to vector<8x33xf32>
      %70 = arith.addf %68, %69 : vector<8x33xf32>
      %71 = vector.extract_strided_slice %70 {offsets = [0, 0], sizes = [8, 32], strides = [1, 1]} : vector<8x33xf32> to vector<8x32xf32>
      %c0_43 = arith.constant 0 : index
      %c0_44 = arith.constant 0 : index
      %c0_45 = arith.constant 0 : index
      %72 = vector.load %arg8[%c0_43, %c0_44, %c0_45] : memref<2x8x32xf32, #tpu.memory_space<vmem>>, vector<1x8x32xf32>
      %73 = vector.shape_cast %72 : vector<1x8x32xf32> to vector<8x32xf32>
      %74 = vector.shape_cast %71 : vector<8x32xf32> to vector<1x8x32xf32>
      tpu.vector_store %arg8[%c0_43, %c0_44, %c0_45], %74 {strides = array<i32>} : memref<2x8x32xf32, #tpu.memory_space<vmem>>, vector<1x8x32xf32>,
      %75 = vector.extract_strided_slice %70 {offsets = [0, 32], sizes = [8, 1], strides = [1, 1]} : vector<8x33xf32> to vector<8x1xf32>
      %76 = tpu.transpose %75, [1, 0] : vector<8x1xf32> -> vector<1x8xf32>
      %c0_46 = arith.constant 0 : index
      %c0_47 = arith.constant 0 : index
      %c0_48 = arith.constant 0 : index
      %77 = vector.load %arg9[%c0_46, %c0_47, %c0_48] : memref<2x1x8xf32, #tpu.memory_space<vmem>>, vector<1x1x8xf32>
      %78 = vector.shape_cast %77 : vector<1x1x8xf32> to vector<1x8xf32>
      %79 = vector.shape_cast %76 : vector<1x8xf32> to vector<1x1x8xf32>
      tpu.vector_store %arg9[%c0_46, %c0_47, %c0_48], %79 {strides = array<i32>} : memref<2x1x8xf32, #tpu.memory_space<vmem>>, vector<1x1x8xf32>,
      %c1_49 = arith.constant 1 : index
      %c0_50 = arith.constant 0 : index
      %c0_51 = arith.constant 0 : index
      %80 = vector.load %arg2[%c1_49, %c0_50, %c0_51] : memref<2x8x16xf32, #tpu.memory_space<vmem>>, vector<1x8x16xf32>
      %81 = vector.shape_cast %80 : vector<1x8x16xf32> to vector<8x16xf32>
      %cst_52 = arith.constant dense<0.000000e+00> : vector<8x33xf32>
      %82 = tpu.matmul %81, %64, %cst_52 {dimension_numbers = #tpu.dot_dimension_numbers<[1], [0], [0], [1], [0, 0, 1, 1], [], []>} : vector<8x16xf32>, vector<16x33xf32>, vector<8x33xf32> -> vector<8x33xf32>
      %83 = vector.broadcast %65 : vector<1x33xf32> to vector<8x33xf32>
      %84 = arith.addf %82, %83 : vector<8x33xf32>
      %85 = vector.extract_strided_slice %84 {offsets = [0, 0], sizes = [8, 32], strides = [1, 1]} : vector<8x33xf32> to vector<8x32xf32>
      %c1_53 = arith.constant 1 : index
      %c0_54 = arith.constant 0 : index
      %c0_55 = arith.constant 0 : index
      %86 = vector.load %arg8[%c1_53, %c0_54, %c0_55] : memref<2x8x32xf32, #tpu.memory_space<vmem>>, vector<1x8x32xf32>
      %87 = vector.shape_cast %86 : vector<1x8x32xf32> to vector<8x32xf32>
      %88 = vector.shape_cast %85 : vector<8x32xf32> to vector<1x8x32xf32>
      tpu.vector_store %arg8[%c1_53, %c0_54, %c0_55], %88 {strides = array<i32>} : memref<2x8x32xf32, #tpu.memory_space<vmem>>, vector<1x8x32xf32>,
      %89 = vector.extract_strided_slice %84 {offsets = [0, 32], sizes = [8, 1], strides = [1, 1]} : vector<8x33xf32> to vector<8x1xf32>
      %90 = tpu.transpose %89, [1, 0] : vector<8x1xf32> -> vector<1x8xf32>
      %c1_56 = arith.constant 1 : index
      %c0_57 = arith.constant 0 : index
      %c0_58 = arith.constant 0 : index
      %91 = vector.load %arg9[%c1_56, %c0_57, %c0_58] : memref<2x1x8xf32, #tpu.memory_space<vmem>>, vector<1x1x8xf32>
      %92 = vector.shape_cast %91 : vector<1x1x8xf32> to vector<1x8xf32>
      %93 = vector.shape_cast %90 : vector<1x8xf32> to vector<1x1x8xf32>
      tpu.vector_store %arg9[%c1_56, %c0_57, %c0_58], %93 {strides = array<i32>} : memref<2x1x8xf32, #tpu.memory_space<vmem>>, vector<1x1x8xf32>,
    } else {
    }
    %c8_i32 = arith.constant 8 : i32
    %3 = arith.muli %arg1, %c8_i32 : i32
    %4 = tpu.assume_multiple %3, 8 : i32
    %c0 = arith.constant 0 : index
    %c0_1 = arith.constant 0 : index
    %5 = vector.load %arg6[%c0, %c0_1] : memref<32x1xf32, #tpu.memory_space<vmem>>, vector<32x1xf32>
    %c0_2 = arith.constant 0 : index
    %c0_3 = arith.constant 0 : index
    %c0_4 = arith.constant 0 : index
    %6 = vector.load %arg8[%c0_2, %c0_3, %c0_4] : memref<2x8x32xf32, #tpu.memory_space<vmem>>, vector<1x8x32xf32>
    %7 = vector.shape_cast %6 : vector<1x8x32xf32> to vector<8x32xf32>
    %c0_5 = arith.constant 0 : index
    %8 = arith.index_cast %4 : i32 to index
    %c0_6 = arith.constant 0 : index
    %9 = vector.load %arg8[%c0_5, %8, %c0_6] : memref<2x8x32xf32, #tpu.memory_space<vmem>>, vector<1x8x32xf32>
    %10 = vector.shape_cast %9 : vector<1x8x32xf32> to vector<8x32xf32>
    %cst = arith.constant dense<0.000000e+00> : vector<8x1xf32>
    %11 = tpu.matmul %10, %5, %cst {dimension_numbers = #tpu.dot_dimension_numbers<[1], [0], [0], [1], [0, 0, 1, 1], [], []>} : vector<8x32xf32>, vector<32x1xf32>, vector<8x1xf32> -> vector<8x1xf32>
    %c0_7 = arith.constant 0 : index
    %c0_8 = arith.constant 0 : index
    %c0_9 = arith.constant 0 : index
    %12 = vector.load %arg9[%c0_7, %c0_8, %c0_9] : memref<2x1x8xf32, #tpu.memory_space<vmem>>, vector<1x1x8xf32>
    %13 = vector.shape_cast %12 : vector<1x1x8xf32> to vector<1x8xf32>
    %14 = vector.broadcast %11 : vector<8x1xf32> to vector<8x8xf32>
    %15 = vector.broadcast %13 : vector<1x8xf32> to vector<8x8xf32>
    %16 = arith.addf %14, %15 : vector<8x8xf32>
    %17 = math.tanh %16 : vector<8x8xf32>
    %c0_10 = arith.constant 0 : index
    %c0_11 = arith.constant 0 : index
    %c0_12 = arith.constant 0 : index
    %18 = vector.load %arg3[%c0_10, %c0_11, %c0_12] : memref<2x8x8xf32, #tpu.memory_space<vmem>>, vector<1x8x8xf32>
    %19 = vector.shape_cast %18 : vector<1x8x8xf32> to vector<8x8xf32>
    %20 = arith.addf %19, %17 : vector<8x8xf32>
    %cst_13 = arith.constant dense<0xFF800000> : vector<8xf32>
    %21 = vector.multi_reduction <maximumf>, %20, %cst_13 [1] : vector<8x8xf32> to vector<8xf32>
    %22 = vector.shape_cast %21 : vector<8xf32> to vector<8x1xf32>
    %23 = vector.broadcast %22 : vector<8x1xf32> to vector<8x8xf32>
    %24 = arith.subf %20, %23 : vector<8x8xf32>
    %25 = math.exp %24 : vector<8x8xf32>
    %cst_14 = arith.constant dense<0.000000e+00> : vector<8x32xf32>
    %26 = tpu.matmul %25, %7, %cst_14 {dimension_numbers = #tpu.dot_dimension_numbers<[1], [0], [0], [1], [0, 0, 1, 1], [], []>} : vector<8x8xf32>, vector<8x32xf32>, vector<8x32xf32> -> vector<8x32xf32>
    %cst_15 = arith.constant dense<0.000000e+00> : vector<8xf32>
    %27 = vector.multi_reduction <add>, %25, %cst_15 [1] : vector<8x8xf32> to vector<8xf32>
    %28 = vector.shape_cast %27 : vector<8xf32> to vector<8x1xf32>
    %cst_16 = arith.constant 1.000000e+00 : f32
    %29 = vector.broadcast %cst_16 : f32 to vector<8x1xf32>
    %30 = arith.divf %29, %28 : vector<8x1xf32>
    %31 = vector.broadcast %30 : vector<8x1xf32> to vector<8x32xf32>
    %32 = arith.mulf %26, %31 : vector<8x32xf32>
    %c1 = arith.constant 1 : index
    %c0_17 = arith.constant 0 : index
    %c0_18 = arith.constant 0 : index
    %33 = vector.load %arg8[%c1, %c0_17, %c0_18] : memref<2x8x32xf32, #tpu.memory_space<vmem>>, vector<1x8x32xf32>
    %34 = vector.shape_cast %33 : vector<1x8x32xf32> to vector<8x32xf32>
    %c1_19 = arith.constant 1 : index
    %35 = arith.index_cast %4 : i32 to index
    %c0_20 = arith.constant 0 : index
    %36 = vector.load %arg8[%c1_19, %35, %c0_20] : memref<2x8x32xf32, #tpu.memory_space<vmem>>, vector<1x8x32xf32>
    %37 = vector.shape_cast %36 : vector<1x8x32xf32> to vector<8x32xf32>
    %cst_21 = arith.constant dense<0.000000e+00> : vector<8x1xf32>
    %38 = tpu.matmul %37, %5, %cst_21 {dimension_numbers = #tpu.dot_dimension_numbers<[1], [0], [0], [1], [0, 0, 1, 1], [], []>} : vector<8x32xf32>, vector<32x1xf32>, vector<8x1xf32> -> vector<8x1xf32>
    %c1_22 = arith.constant 1 : index
    %c0_23 = arith.constant 0 : index
    %c0_24 = arith.constant 0 : index
    %39 = vector.load %arg9[%c1_22, %c0_23, %c0_24] : memref<2x1x8xf32, #tpu.memory_space<vmem>>, vector<1x1x8xf32>
    %40 = vector.shape_cast %39 : vector<1x1x8xf32> to vector<1x8xf32>
    %41 = vector.broadcast %38 : vector<8x1xf32> to vector<8x8xf32>
    %42 = vector.broadcast %40 : vector<1x8xf32> to vector<8x8xf32>
    %43 = arith.addf %41, %42 : vector<8x8xf32>
    %44 = math.tanh %43 : vector<8x8xf32>
    %c1_25 = arith.constant 1 : index
    %c0_26 = arith.constant 0 : index
    %c0_27 = arith.constant 0 : index
    %45 = vector.load %arg3[%c1_25, %c0_26, %c0_27] : memref<2x8x8xf32, #tpu.memory_space<vmem>>, vector<1x8x8xf32>
    %46 = vector.shape_cast %45 : vector<1x8x8xf32> to vector<8x8xf32>
    %47 = arith.addf %46, %44 : vector<8x8xf32>
    %cst_28 = arith.constant dense<0xFF800000> : vector<8xf32>
    %48 = vector.multi_reduction <maximumf>, %47, %cst_28 [1] : vector<8x8xf32> to vector<8xf32>
    %49 = vector.shape_cast %48 : vector<8xf32> to vector<8x1xf32>
    %50 = vector.broadcast %49 : vector<8x1xf32> to vector<8x8xf32>
    %51 = arith.subf %47, %50 : vector<8x8xf32>
    %52 = math.exp %51 : vector<8x8xf32>
    %cst_29 = arith.constant dense<0.000000e+00> : vector<8x32xf32>
    %53 = tpu.matmul %52, %34, %cst_29 {dimension_numbers = #tpu.dot_dimension_numbers<[1], [0], [0], [1], [0, 0, 1, 1], [], []>} : vector<8x8xf32>, vector<8x32xf32>, vector<8x32xf32> -> vector<8x32xf32>
    %cst_30 = arith.constant dense<0.000000e+00> : vector<8xf32>
    %54 = vector.multi_reduction <add>, %52, %cst_30 [1] : vector<8x8xf32> to vector<8xf32>
    %55 = vector.shape_cast %54 : vector<8xf32> to vector<8x1xf32>
    %cst_31 = arith.constant 1.000000e+00 : f32
    %56 = vector.broadcast %cst_31 : f32 to vector<8x1xf32>
    %57 = arith.divf %56, %55 : vector<8x1xf32>
    %58 = vector.broadcast %57 : vector<8x1xf32> to vector<8x32xf32>
    %59 = arith.mulf %53, %58 : vector<8x32xf32>
    %60 = tpu.concatenate %32, %59 in 1 : vector<8x32xf32>, vector<8x32xf32> -> vector<8x64xf32>
    %c0_32 = arith.constant 0 : index
    %c0_33 = arith.constant 0 : index
    %c0_34 = arith.constant 0 : index
    %61 = vector.load %arg7[%c0_32, %c0_33, %c0_34] : memref<1x8x64xf32, #tpu.memory_space<vmem>>, vector<1x8x64xf32>
    %62 = vector.shape_cast %61 : vector<1x8x64xf32> to vector<8x64xf32>
    %63 = vector.shape_cast %60 : vector<8x64xf32> to vector<1x8x64xf32>
    tpu.vector_store %arg7[%c0_32, %c0_33, %c0_34], %63 {strides = array<i32>} : memref<1x8x64xf32, #tpu.memory_space<vmem>>, vector<1x8x64xf32>,
    return
  }
  func.func @transform_0(%arg0: i32, %arg1: i32) -> (i32, i32, i32) {
    %c0_i32 = arith.constant 0 : i32
    %c0_i32_0 = arith.constant 0 : i32
    %c0_i32_1 = arith.constant 0 : i32
    return %arg0, %c0_i32, %c0_i32_0 : i32, i32, i32
  }
  func.func @transform_1(%arg0: i32, %arg1: i32) -> (i32, i32, i32) {
    %c0_i32 = arith.constant 0 : i32
    %c0_i32_0 = arith.constant 0 : i32
    return %arg0, %arg1, %c0_i32 : i32, i32, i32
  }
  func.func @transform_2(%arg0: i32, %arg1: i32) -> (i32, i32) {
    %c0_i32 = arith.constant 0 : i32
    %c0_i32_0 = arith.constant 0 : i32
    %c0_i32_1 = arith.constant 0 : i32
    return %c0_i32, %c0_i32_0 : i32, i32
  }
  func.func @transform_3(%arg0: i32, %arg1: i32) -> (i32, i32) {
    %c0_i32 = arith.constant 0 : i32
    %c0_i32_0 = arith.constant 0 : i32
    %c0_i32_1 = arith.constant 0 : i32
    return %c0_i32, %c0_i32_0 : i32, i32
  }
  func.func @transform_4(%arg0: i32, %arg1: i32) -> (i32, i32) {
    %c0_i32 = arith.constant 0 : i32
    %c0_i32_0 = arith.constant 0 : i32
    %c0_i32_1 = arith.constant 0 : i32
    return %c0_i32, %c0_i32_0 : i32, i32
  }
  func.func @transform_5(%arg0: i32, %arg1: i32) -> (i32, i32, i32) {
    %c0_i32 = arith.constant 0 : i32
    %c0_i32_0 = arith.constant 0 : i32
    return %arg0, %arg1, %c0_i32 : i32, i32, i32
  }
}

</mosaic_0001>

<llo_original>
// kernel: tpu_custom_call.1
$region0: #{tpu_custom_call.1}
  #allocation0 [shape = 'u32[]', space=smem, size = 0x4, offset = 0x4, fixed_abs, tag = 'smem constant byte address 0x4 - core index']
  #allocation1 [shape = 'u32[144,128]{1,0:T(1,128)}', space=vmem, size = 0x12000, scoped, tag = 'internal scratch']
  #allocation2 [shape = 'f32[2,8,32]{2,1,0:T(8,128)}', space=vmem, size = 0x2000, scoped, tag = 'scratch operand']
  #allocation3 [shape = 'f32[2,1,8]{2,1,0:T(1,128)}', space=vmem, size = 0x400, scoped, tag = 'scratch operand']
  %s0 = inlined_call_operand.vmem [shape: f32[2,8,16], index: 0, kind: input, shape index: {}]
  %s1 = inlined_call_operand.vmem [shape: f32[2,8,8], index: 1, kind: input, shape index: {}]
  %s2 = inlined_call_operand.hbm [shape: f32[16,33], index: 2, kind: input, shape index: {}]
  %s3 = inlined_call_operand.vmem [shape: f32[1,33], index: 3, kind: input, shape index: {}]
  %s4 = inlined_call_operand.vmem [shape: f32[32,1], index: 4, kind: input, shape index: {}]
  %s5 = inlined_call_operand.hbm [shape: f32[1,8,64], index: 5, kind: output, shape index: {}]
  %s6 = sld [smem:[#allocation0]]
  $region38: #{tpu_custom_call.1} parent=0
    _
  %s8 = ssub.s32 1, %s6
  %s9 = scalar_select 0, %s8, %s6
  $region1: #{tpu_custom_call.1} parent=0
    #allocation4 [shape = 'u8[8192]{0}', space=vmem, size = 0x2000, scoped, tag = 'input window, operand 2, single buffered']
    #allocation5 [shape = 's32[1]{0}', space=sflag, size = 0x4, scoped, tag = 'scoped memory for tpu_custom_call.1']
    #allocation6 [shape = 's32[1]{0}', space=sflag, size = 0x4, scoped, tag = 'scoped memory for tpu_custom_call.1']
    #allocation7 [shape = 'u8[4096]{0}', space=vmem, size = 0x1000, scoped, tag = 'output window, operand 0, single buffered']
    %10 = vsyncpa [#allocation5], 0
    %11 = vsyncpa [#allocation6], 0
    // Predicated region
    $region2: #{tpu_custom_call.1} parent=1 // pred_check
      _
    $region3: #{tpu_custom_call.1} parent=1 // pred_check_branch
      %13 = sbr.rel (0) target = $region5
    $region4: #{tpu_custom_call.1} parent=1 // pred_region
      _
    $region5: #{tpu_custom_call.1} parent=1 // pred_fallthru
      _
    // Predicated region
    $region6: #{tpu_custom_call.1} parent=1 // pred_check
      _
    $region7: #{tpu_custom_call.1} parent=1 // pred_check_branch
      %15 = sbr.rel (0) target = $region9
    $region8: #{tpu_custom_call.1} parent=1 // pred_region
      _
    $region9: #{tpu_custom_call.1} parent=1 // pred_fallthru
      _
    // Predicated region
    $region10: #{tpu_custom_call.1} parent=1 // pred_check
      _
    $region11: #{tpu_custom_call.1} parent=1 // pred_check_branch
      %17 = sbr.rel (0) target = $region13
    $region12: #{tpu_custom_call.1} parent=1 // pred_region
      %s19 = ssub.s32 256, 256
      %20 = vsyncadd [#allocation5], %s19
      %s21 = sshll.u32 [#allocation4], 4
      %s22 = int_to_ptr.vmem [resolvable:$true] %s21
      %27 = dma.hbm_to_vmem [thread:$0]  %s2, 256, %s22, [#allocation5], 128, 128, 8
    $region13: #{tpu_custom_call.1} parent=1 // pred_fallthru
      _
    // Predicated region
    $region14: #{tpu_custom_call.1} parent=1 // pred_check
      _
    $region15: #{tpu_custom_call.1} parent=1 // pred_check_branch
      %29 = sbr.rel (0) target = $region17
    $region16: #{tpu_custom_call.1} parent=1 // pred_region
      _
    $region17: #{tpu_custom_call.1} parent=1 // pred_fallthru
      _
    // Predicated region
    $region18: #{tpu_custom_call.1} parent=1 // pred_check
      _
    $region19: #{tpu_custom_call.1} parent=1 // pred_check_branch
      %31 = sbr.rel (0) target = $region21
    $region20: #{tpu_custom_call.1} parent=1 // pred_region
      _
    $region21: #{tpu_custom_call.1} parent=1 // pred_fallthru
      _
    // Predicated region
    $region22: #{tpu_custom_call.1} parent=1 // pred_check
      _
    $region23: #{tpu_custom_call.1} parent=1 // pred_check_branch
      %33 = sbr.rel (0) target = $region25
    $region24: #{tpu_custom_call.1} parent=1 // pred_region
      %34 = dma.done [#allocation5], 256
    $region25: #{tpu_custom_call.1} parent=1 // pred_fallthru
      _
    %p35 = scmp.eq.s32.totalorder 0, 0
    // Predicated region
    $region26: #{tpu_custom_call.1} parent=1 // pred_check
      %p36 = pneg %p35
    $region27: #{tpu_custom_call.1} parent=1 // pred_check_branch
      %38 = sbr.rel (%p36) target = $region29
    $region28: #{tpu_custom_call.1} parent=1 // pred_region
      %v39 = vld [vmem:[#allocation4] sm:$0xff]
      %v40 = vld [vmem:[#allocation4 + $0x8] sm:$0xff]
      %v41 = vld [vmem:[%s3] sm:$0x1]
      %v42 = vld [vmem:[%s0] sm:$0xff]
      %v44 = vlaneseq
      %v45 = vshrl.u32 %v44, 7
      %v46 = vsub.s32 0, %v45
      %v47 = vrot.slane %v41, %v46
      %vm49 = vcmask 130048
      %v51 = vsel %vm49, %v42, 0
      %53 = vmatprep.subr.mxu0 0.0
      %54 = vmatpush1.msra.mxu0 0.0
      %55 = vmatprep.subr.mxu0 0.0
      %56 = vmatpush1.msra.mxu0 0.0
      %57 = vmatprep.subr.mxu0 0.0
      %58 = vmatpush1.msra.mxu0 0.0
      %59 = vmatprep.subr.mxu0 0.0
      %60 = vmatpush1.msra.mxu0 0.0
      %61 = vmatprep.subr.mxu0 0.0
      %62 = vmatpush1.msra.mxu0 0.0
      %63 = vmatprep.subr.mxu0 0.0
      %64 = vmatpush1.msra.mxu0 0.0
      %65 = vmatprep.subr.mxu0 0.0
      %66 = vmatpush1.msra.mxu0 0.0
      %67 = vmatprep.subr.mxu0 0.0
      %68 = vmatpush1.msra.mxu0 0.0
      %69 = vmatprep.subr.mxu0 0.0
      %70 = vmatpush1.msra.mxu0 0.0
      %71 = vmatprep.subr.mxu0 0.0
      %72 = vmatpush1.msra.mxu0 0.0
      %73 = vmatprep.subr.mxu0 0.0
      %74 = vmatpush1.msra.mxu0 0.0
      %75 = vmatprep.subr.mxu0 0.0
      %76 = vmatpush1.msra.mxu0 0.0
      %77 = vmatprep.subr.mxu0 0.0
      %78 = vmatpush1.msra.mxu0 0.0
      %79 = vmatprep.subr.mxu0 0.0
      %80 = vmatpush1.msra.mxu0 0.0
      %81 = vmatprep.subr.mxu0 0.0
      %82 = vmatpush1.msra.mxu0 %v40
      %83 = vmatprep.subr.mxu0 0.0
      %84 = vmatpush1.msra.mxu0 %v39
      %85 = vmatprep.subr.mxu0 0.0
      %86 = vmatpush2.msra.mxu0 0.0
      %87 = vmatprep.subr.mxu0 0.0
      %88 = vmatpush2.msra.mxu0 0.0
      %89 = vmatprep.subr.mxu0 0.0
      %90 = vmatpush2.msra.mxu0 0.0
      %91 = vmatprep.subr.mxu0 0.0
      %92 = vmatpush2.msra.mxu0 0.0
      %93 = vmatprep.subr.mxu0 0.0
      %94 = vmatpush2.msra.mxu0 0.0
      %95 = vmatprep.subr.mxu0 0.0
      %96 = vmatpush2.msra.mxu0 0.0
      %97 = vmatprep.subr.mxu0 0.0
      %98 = vmatpush2.msra.mxu0 0.0
      %99 = vmatprep.subr.mxu0 0.0
      %100 = vmatpush2.msra.mxu0 0.0
      %101 = vmatprep.subr.mxu0 0.0
      %102 = vmatpush2.msra.mxu0 0.0
      %103 = vmatprep.subr.mxu0 0.0
      %104 = vmatpush2.msra.mxu0 0.0
      %105 = vmatprep.subr.mxu0 0.0
      %106 = vmatpush2.msra.mxu0 0.0
      %107 = vmatprep.subr.mxu0 0.0
      %108 = vmatpush2.msra.mxu0 0.0
      %109 = vmatprep.subr.mxu0 0.0
      %110 = vmatpush2.msra.mxu0 0.0
      %111 = vmatprep.subr.mxu0 0.0
      %112 = vmatpush2.msra.mxu0 0.0
      %113 = vmatprep.subr.mxu0 0.0
      %114 = vmatpush2.msra.mxu0 0.0
      %115 = vmatprep.subr.mxu0 0.0
      %116 = vmatpush2.msra.mxu0 0.0
      %117 = vmatprep.mubr.f32.mxu0 0.0
      %118 = vmatmul.mubr.f32.gmra.mxu0 %v51
      %v119 = vpop.f32.mrf.mxu0
      %v120 = vadd.f32 %v47, %v119
      %v121 = vpop.f32.mrf.mxu0
      %122 = vdwg.mxu0
      %vm123 = vcmask 261120
      %124 = vst.msk [vmem:[#allocation2] sm:$0xff] %vm123, %v120
      %126 = vrot.lane.b32.xlu0 %v120, 96
      %v127 = vpop.permute.xlu0 %126
      %129 = vxpose.xlu0.b32.start [1/16] %v127, 128
      %130 = vxpose.xlu0.b32.cont [2/16] 0.0, 128
      %131 = vxpose.xlu0.b32.cont [3/16] 0.0, 128
      %132 = vxpose.xlu0.b32.cont [4/16] 0.0, 128
      %133 = vxpose.xlu0.b32.cont [5/16] 0.0, 128
      %134 = vxpose.xlu0.b32.cont [6/16] 0.0, 128
      %135 = vxpose.xlu0.b32.cont [7/16] 0.0, 128
      %136 = vxpose.xlu0.b32.cont [8/16] 0.0, 128
      %137 = vxpose.xlu0.b32.cont [9/16] 0.0, 128
      %138 = vxpose.xlu0.b32.cont [10/16] 0.0, 128
      %139 = vxpose.xlu0.b32.cont [11/16] 0.0, 128
      %140 = vxpose.xlu0.b32.cont [12/16] 0.0, 128
      %141 = vxpose.xlu0.b32.cont [13/16] 0.0, 128
      %142 = vxpose.xlu0.b32.cont [14/16] 0.0, 128
      %143 = vxpose.xlu0.b32.cont [15/16] 0.0, 128
      %144 = vxpose.xlu0.b32.end [16/16] 0.0, 128
      %v145 = vpop.trf.xlu0
      %v146 = vpop.trf.xlu0
      %v147 = vpop.trf.xlu0
      %v148 = vpop.trf.xlu0
      %v149 = vpop.trf.xlu0
      %v150 = vpop.trf.xlu0
      %v151 = vpop.trf.xlu0
      %v152 = vpop.trf.xlu0
      %v153 = vpop.trf.xlu0
      %v154 = vpop.trf.xlu0
      %v155 = vpop.trf.xlu0
      %v156 = vpop.trf.xlu0
      %v157 = vpop.trf.xlu0
      %v158 = vpop.trf.xlu0
      %v159 = vpop.trf.xlu0
      %v160 = vpop.trf.xlu0
      %vm161 = vcmask 57344
      %162 = vst.msk [vmem:[#allocation3] sm:$0x1] %vm161, %v145
      %s163 = scalar_lea.vmem %s0, 8
      %v164 = vld [vmem:[%s163] sm:$0xff]
      %v166 = vsel %vm49, %v164, 0
      %168 = vmatprep.subr.mxu0 0.0
      %169 = vmatpush1.msra.mxu0 0.0
      %170 = vmatprep.subr.mxu0 0.0
      %171 = vmatpush1.msra.mxu0 0.0
      %172 = vmatprep.subr.mxu0 0.0
      %173 = vmatpush1.msra.mxu0 0.0
      %174 = vmatprep.subr.mxu0 0.0
      %175 = vmatpush1.msra.mxu0 0.0
      %176 = vmatprep.subr.mxu0 0.0
      %177 = vmatpush1.msra.mxu0 0.0
      %178 = vmatprep.subr.mxu0 0.0
      %179 = vmatpush1.msra.mxu0 0.0
      %180 = vmatprep.subr.mxu0 0.0
      %181 = vmatpush1.msra.mxu0 0.0
      %182 = vmatprep.subr.mxu0 0.0
      %183 = vmatpush1.msra.mxu0 0.0
      %184 = vmatprep.subr.mxu0 0.0
      %185 = vmatpush1.msra.mxu0 0.0
      %186 = vmatprep.subr.mxu0 0.0
      %187 = vmatpush1.msra.mxu0 0.0
      %188 = vmatprep.subr.mxu0 0.0
      %189 = vmatpush1.msra.mxu0 0.0
      %190 = vmatprep.subr.mxu0 0.0
      %191 = vmatpush1.msra.mxu0 0.0
      %192 = vmatprep.subr.mxu0 0.0
      %193 = vmatpush1.msra.mxu0 0.0
      %194 = vmatprep.subr.mxu0 0.0
      %195 = vmatpush1.msra.mxu0 0.0
      %196 = vmatprep.subr.mxu0 0.0
      %197 = vmatpush1.msra.mxu0 %v40
      %198 = vmatprep.subr.mxu0 0.0
      %199 = vmatpush1.msra.mxu0 %v39
      %200 = vmatprep.subr.mxu0 0.0
      %201 = vmatpush2.msra.mxu0 0.0
      %202 = vmatprep.subr.mxu0 0.0
      %203 = vmatpush2.msra.mxu0 0.0
      %204 = vmatprep.subr.mxu0 0.0
      %205 = vmatpush2.msra.mxu0 0.0
      %206 = vmatprep.subr.mxu0 0.0
      %207 = vmatpush2.msra.mxu0 0.0
      %208 = vmatprep.subr.mxu0 0.0
      %209 = vmatpush2.msra.mxu0 0.0
      %210 = vmatprep.subr.mxu0 0.0
      %211 = vmatpush2.msra.mxu0 0.0
      %212 = vmatprep.subr.mxu0 0.0
      %213 = vmatpush2.msra.mxu0 0.0
      %214 = vmatprep.subr.mxu0 0.0
      %215 = vmatpush2.msra.mxu0 0.0
      %216 = vmatprep.subr.mxu0 0.0
      %217 = vmatpush2.msra.mxu0 0.0
      %218 = vmatprep.subr.mxu0 0.0
      %219 = vmatpush2.msra.mxu0 0.0
      %220 = vmatprep.subr.mxu0 0.0
      %221 = vmatpush2.msra.mxu0 0.0
      %222 = vmatprep.subr.mxu0 0.0
      %223 = vmatpush2.msra.mxu0 0.0
      %224 = vmatprep.subr.mxu0 0.0
      %225 = vmatpush2.msra.mxu0 0.0
      %226 = vmatprep.subr.mxu0 0.0
      %227 = vmatpush2.msra.mxu0 0.0
      %228 = vmatprep.subr.mxu0 0.0
      %229 = vmatpush2.msra.mxu0 0.0
      %230 = vmatprep.subr.mxu0 0.0
      %231 = vmatpush2.msra.mxu0 0.0
      %232 = vmatprep.mubr.f32.mxu0 0.0
      %233 = vmatmul.mubr.f32.gmra.mxu0 %v166
      %v234 = vpop.f32.mrf.mxu0
      %v235 = vadd.f32 %v47, %v234
      %v236 = vpop.f32.mrf.mxu0
      %237 = vdwg.mxu0
      %s238 = scalar_lea.vmem [#allocation2], 8
      %239 = vst.msk [vmem:[%s238] sm:$0xff] %vm123, %v235
      %241 = vrot.lane.b32.xlu0 %v235, 96
      %v242 = vpop.permute.xlu0 %241
      %244 = vxpose.xlu0.b32.start [1/16] %v242, 128
      %245 = vxpose.xlu0.b32.cont [2/16] 0.0, 128
      %246 = vxpose.xlu0.b32.cont [3/16] 0.0, 128
      %247 = vxpose.xlu0.b32.cont [4/16] 0.0, 128
      %248 = vxpose.xlu0.b32.cont [5/16] 0.0, 128
      %249 = vxpose.xlu0.b32.cont [6/16] 0.0, 128
      %250 = vxpose.xlu0.b32.cont [7/16] 0.0, 128
      %251 = vxpose.xlu0.b32.cont [8/16] 0.0, 128
      %252 = vxpose.xlu0.b32.cont [9/16] 0.0, 128
      %253 = vxpose.xlu0.b32.cont [10/16] 0.0, 128
      %254 = vxpose.xlu0.b32.cont [11/16] 0.0, 128
      %255 = vxpose.xlu0.b32.cont [12/16] 0.0, 128
      %256 = vxpose.xlu0.b32.cont [13/16] 0.0, 128
      %257 = vxpose.xlu0.b32.cont [14/16] 0.0, 128
      %258 = vxpose.xlu0.b32.cont [15/16] 0.0, 128
      %259 = vxpose.xlu0.b32.end [16/16] 0.0, 128
      %v260 = vpop.trf.xlu0
      %v261 = vpop.trf.xlu0
      %v262 = vpop.trf.xlu0
      %v263 = vpop.trf.xlu0
      %v264 = vpop.trf.xlu0
      %v265 = vpop.trf.xlu0
      %v266 = vpop.trf.xlu0
      %v267 = vpop.trf.xlu0
      %v268 = vpop.trf.xlu0
      %v269 = vpop.trf.xlu0
      %v270 = vpop.trf.xlu0
      %v271 = vpop.trf.xlu0
      %v272 = vpop.trf.xlu0
      %v273 = vpop.trf.xlu0
      %v274 = vpop.trf.xlu0
      %v275 = vpop.trf.xlu0
      %s276 = scalar_lea.vmem [#allocation3], 1
      %277 = vst.msk [vmem:[%s276] sm:$0x1] %vm161, %v260
    $region29: #{tpu_custom_call.1} parent=1 // pred_fallthru
      _
    %s278 = smul.u32 0, 8
    %v279 = vld [vmem:[%s4] sm:$0xff]
    %v280 = vld [vmem:[%s4 + $0x8] sm:$0xff]
    %v281 = vld [vmem:[%s4 + $0x10] sm:$0xff]
    %v282 = vld [vmem:[%s4 + $0x18] sm:$0xff]
    %v283 = vld [vmem:[#allocation2] sm:$0xff]
    %s284 = scalar_lea.vmem [#allocation2], %s278
    %v285 = vld [vmem:[%s284] sm:$0xff]
    %vm286 = vcmask 261120
    %v288 = vsel %vm286, %v285, 0
    %290 = vmatprep.subr.mxu0 0.0
    %291 = vmatpush1.msra.mxu0 0.0
    %292 = vmatprep.subr.mxu0 0.0
    %293 = vmatpush1.msra.mxu0 0.0
    %294 = vmatprep.subr.mxu0 0.0
    %295 = vmatpush1.msra.mxu0 0.0
    %296 = vmatprep.subr.mxu0 0.0
    %297 = vmatpush1.msra.mxu0 0.0
    %298 = vmatprep.subr.mxu0 0.0
    %299 = vmatpush1.msra.mxu0 0.0
    %300 = vmatprep.subr.mxu0 0.0
    %301 = vmatpush1.msra.mxu0 0.0
    %302 = vmatprep.subr.mxu0 0.0
    %303 = vmatpush1.msra.mxu0 0.0
    %304 = vmatprep.subr.mxu0 0.0
    %305 = vmatpush1.msra.mxu0 0.0
    %306 = vmatprep.subr.mxu0 0.0
    %307 = vmatpush1.msra.mxu0 0.0
    %308 = vmatprep.subr.mxu0 0.0
    %309 = vmatpush1.msra.mxu0 0.0
    %310 = vmatprep.subr.mxu0 0.0
    %311 = vmatpush1.msra.mxu0 0.0
    %312 = vmatprep.subr.mxu0 0.0
    %313 = vmatpush1.msra.mxu0 0.0
    %314 = vmatprep.subr.mxu0 0.0
    %315 = vmatpush1.msra.mxu0 %v282
    %316 = vmatprep.subr.mxu0 0.0
    %317 = vmatpush1.msra.mxu0 %v281
    %318 = vmatprep.subr.mxu0 0.0
    %319 = vmatpush1.msra.mxu0 %v280
    %320 = vmatprep.subr.mxu0 0.0
    %321 = vmatpush1.msra.mxu0 %v279
    %322 = vmatprep.subr.mxu0 0.0
    %323 = vmatpush2.msra.mxu0 0.0
    %324 = vmatprep.subr.mxu0 0.0
    %325 = vmatpush2.msra.mxu0 0.0
    %326 = vmatprep.subr.mxu0 0.0
    %327 = vmatpush2.msra.mxu0 0.0
    %328 = vmatprep.subr.mxu0 0.0
    %329 = vmatpush2.msra.mxu0 0.0
    %330 = vmatprep.subr.mxu0 0.0
    %331 = vmatpush2.msra.mxu0 0.0
    %332 = vmatprep.subr.mxu0 0.0
    %333 = vmatpush2.msra.mxu0 0.0
    %334 = vmatprep.subr.mxu0 0.0
    %335 = vmatpush2.msra.mxu0 0.0
    %336 = vmatprep.subr.mxu0 0.0
    %337 = vmatpush2.msra.mxu0 0.0
    %338 = vmatprep.subr.mxu0 0.0
    %339 = vmatpush2.msra.mxu0 0.0
    %340 = vmatprep.subr.mxu0 0.0
    %341 = vmatpush2.msra.mxu0 0.0
    %342 = vmatprep.subr.mxu0 0.0
    %343 = vmatpush2.msra.mxu0 0.0
    %344 = vmatprep.subr.mxu0 0.0
    %345 = vmatpush2.msra.mxu0 0.0
    %346 = vmatprep.subr.mxu0 0.0
    %347 = vmatpush2.msra.mxu0 0.0
    %348 = vmatprep.subr.mxu0 0.0
    %349 = vmatpush2.msra.mxu0 0.0
    %350 = vmatprep.subr.mxu0 0.0
    %351 = vmatpush2.msra.mxu0 0.0
    %352 = vmatprep.subr.mxu0 0.0
    %353 = vmatpush2.msra.mxu0 0.0
    %354 = vmatprep.mubr.f32.mxu0 0.0
    %355 = vmatmul.mubr.f32.gmra.mxu0 %v288
    %v356 = vpop.f32.mrf.mxu0
    %v357 = vadd.f32 0.0, %v356
    %v358 = vpop.f32.mrf.mxu0
    %359 = vdwg.mxu0
    %v360 = vld [vmem:[#allocation3] sm:$0x1]
    %362 = vset.pattern.permute.xlu0 0
    %363 = vperm.xlu0 %362, %v357
    %v364 = vpop.permute.xlu0 %363
    %v367 = vlaneseq
    %v368 = vshrl.u32 %v367, 7
    %v369 = vsub.s32 0, %v368
    %v370 = vrot.slane %v360, %v369
    %v372 = vadd.f32 %v364, %v370
    %v373 = vtanh.pop %v372
    %v374 = vld [vmem:[%s1] sm:$0xff]
    %v375 = vadd.f32 %v374, %v373
    %vm376 = vcmask 64512
    %v377 = vsel %vm376, %v375, -inf
    %378 = vmax.xlane.f32.xlu0 %v377
    %v379 = vpop.xlane.xlu0 %378
    %v380 = vsub.f32 %v375, %v379
    %v381 = vmul.f32 %v380, 1.442695
    %v382 = vpow.pop %v381
    %v384 = vsel %vm376, %v382, 0
    %386 = vmatprep.subr.mxu0 0.0
    %387 = vmatpush1.msra.mxu0 0.0
    %388 = vmatprep.subr.mxu0 0.0
    %389 = vmatpush1.msra.mxu0 0.0
    %390 = vmatprep.subr.mxu0 0.0
    %391 = vmatpush1.msra.mxu0 0.0
    %392 = vmatprep.subr.mxu0 0.0
    %393 = vmatpush1.msra.mxu0 0.0
    %394 = vmatprep.subr.mxu0 0.0
    %395 = vmatpush1.msra.mxu0 0.0
    %396 = vmatprep.subr.mxu0 0.0
    %397 = vmatpush1.msra.mxu0 0.0
    %398 = vmatprep.subr.mxu0 0.0
    %399 = vmatpush1.msra.mxu0 0.0
    %400 = vmatprep.subr.mxu0 0.0
    %401 = vmatpush1.msra.mxu0 0.0
    %402 = vmatprep.subr.mxu0 0.0
    %403 = vmatpush1.msra.mxu0 0.0
    %404 = vmatprep.subr.mxu0 0.0
    %405 = vmatpush1.msra.mxu0 0.0
    %406 = vmatprep.subr.mxu0 0.0
    %407 = vmatpush1.msra.mxu0 0.0
    %408 = vmatprep.subr.mxu0 0.0
    %409 = vmatpush1.msra.mxu0 0.0
    %410 = vmatprep.subr.mxu0 0.0
    %411 = vmatpush1.msra.mxu0 0.0
    %412 = vmatprep.subr.mxu0 0.0
    %413 = vmatpush1.msra.mxu0 0.0
    %414 = vmatprep.subr.mxu0 0.0
    %415 = vmatpush1.msra.mxu0 0.0
    %416 = vmatprep.subr.mxu0 0.0
    %417 = vmatpush1.msra.mxu0 %v283
    %418 = vmatprep.subr.mxu0 0.0
    %419 = vmatpush2.msra.mxu0 0.0
    %420 = vmatprep.subr.mxu0 0.0
    %421 = vmatpush2.msra.mxu0 0.0
    %422 = vmatprep.subr.mxu0 0.0
    %423 = vmatpush2.msra.mxu0 0.0
    %424 = vmatprep.subr.mxu0 0.0
    %425 = vmatpush2.msra.mxu0 0.0
    %426 = vmatprep.subr.mxu0 0.0
    %427 = vmatpush2.msra.mxu0 0.0
    %428 = vmatprep.subr.mxu0 0.0
    %429 = vmatpush2.msra.mxu0 0.0
    %430 = vmatprep.subr.mxu0 0.0
    %431 = vmatpush2.msra.mxu0 0.0
    %432 = vmatprep.subr.mxu0 0.0
    %433 = vmatpush2.msra.mxu0 0.0
    %434 = vmatprep.subr.mxu0 0.0
    %435 = vmatpush2.msra.mxu0 0.0
    %436 = vmatprep.subr.mxu0 0.0
    %437 = vmatpush2.msra.mxu0 0.0
    %438 = vmatprep.subr.mxu0 0.0
    %439 = vmatpush2.msra.mxu0 0.0
    %440 = vmatprep.subr.mxu0 0.0
    %441 = vmatpush2.msra.mxu0 0.0
    %442 = vmatprep.subr.mxu0 0.0
    %443 = vmatpush2.msra.mxu0 0.0
    %444 = vmatprep.subr.mxu0 0.0
    %445 = vmatpush2.msra.mxu0 0.0
    %446 = vmatprep.subr.mxu0 0.0
    %447 = vmatpush2.msra.mxu0 0.0
    %448 = vmatprep.subr.mxu0 0.0
    %449 = vmatpush2.msra.mxu0 0.0
    %450 = vmatprep.mubr.f32.mxu0 0.0
    %451 = vmatmul.mubr.f32.gmra.mxu0 %v384
    %v452 = vpop.f32.mrf.mxu0
    %v453 = vadd.f32 0.0, %v452
    %v454 = vpop.f32.mrf.mxu0
    %455 = vdwg.mxu0
    %v456 = vsel %vm376, %v382, 0.0
    %457 = vadd.xlane.f32.xlu0 %v456
    %v458 = vpop.xlane.xlu0 %457
    %v459 = vrcp.pop %v458
    %v460 = vmul.f32 1.0, %v459
    %v461 = vmul.f32 %v453, %v460
    %s462 = scalar_lea.vmem [#allocation2], 8
    %v463 = vld [vmem:[%s462] sm:$0xff]
    %s464 = sadd.s32 %s278, 8
    %s465 = scalar_lea.vmem [#allocation2], %s464
    %v466 = vld [vmem:[%s465] sm:$0xff]
    %v468 = vsel %vm286, %v466, 0
    %470 = vmatprep.subr.mxu0 0.0
    %471 = vmatpush1.msra.mxu0 0.0
    %472 = vmatprep.subr.mxu0 0.0
    %473 = vmatpush1.msra.mxu0 0.0
    %474 = vmatprep.subr.mxu0 0.0
    %475 = vmatpush1.msra.mxu0 0.0
    %476 = vmatprep.subr.mxu0 0.0
    %477 = vmatpush1.msra.mxu0 0.0
    %478 = vmatprep.subr.mxu0 0.0
    %479 = vmatpush1.msra.mxu0 0.0
    %480 = vmatprep.subr.mxu0 0.0
    %481 = vmatpush1.msra.mxu0 0.0
    %482 = vmatprep.subr.mxu0 0.0
    %483 = vmatpush1.msra.mxu0 0.0
    %484 = vmatprep.subr.mxu0 0.0
    %485 = vmatpush1.msra.mxu0 0.0
    %486 = vmatprep.subr.mxu0 0.0
    %487 = vmatpush1.msra.mxu0 0.0
    %488 = vmatprep.subr.mxu0 0.0
    %489 = vmatpush1.msra.mxu0 0.0
    %490 = vmatprep.subr.mxu0 0.0
    %491 = vmatpush1.msra.mxu0 0.0
    %492 = vmatprep.subr.mxu0 0.0
    %493 = vmatpush1.msra.mxu0 0.0
    %494 = vmatprep.subr.mxu0 0.0
    %495 = vmatpush1.msra.mxu0 %v282
    %496 = vmatprep.subr.mxu0 0.0
    %497 = vmatpush1.msra.mxu0 %v281
    %498 = vmatprep.subr.mxu0 0.0
    %499 = vmatpush1.msra.mxu0 %v280
    %500 = vmatprep.subr.mxu0 0.0
    %501 = vmatpush1.msra.mxu0 %v279
    %502 = vmatprep.subr.mxu0 0.0
    %503 = vmatpush2.msra.mxu0 0.0
    %504 = vmatprep.subr.mxu0 0.0
    %505 = vmatpush2.msra.mxu0 0.0
    %506 = vmatprep.subr.mxu0 0.0
    %507 = vmatpush2.msra.mxu0 0.0
    %508 = vmatprep.subr.mxu0 0.0
    %509 = vmatpush2.msra.mxu0 0.0
    %510 = vmatprep.subr.mxu0 0.0
    %511 = vmatpush2.msra.mxu0 0.0
    %512 = vmatprep.subr.mxu0 0.0
    %513 = vmatpush2.msra.mxu0 0.0
    %514 = vmatprep.subr.mxu0 0.0
    %515 = vmatpush2.msra.mxu0 0.0
    %516 = vmatprep.subr.mxu0 0.0
    %517 = vmatpush2.msra.mxu0 0.0
    %518 = vmatprep.subr.mxu0 0.0
    %519 = vmatpush2.msra.mxu0 0.0
    %520 = vmatprep.subr.mxu0 0.0
    %521 = vmatpush2.msra.mxu0 0.0
    %522 = vmatprep.subr.mxu0 0.0
    %523 = vmatpush2.msra.mxu0 0.0
    %524 = vmatprep.subr.mxu0 0.0
    %525 = vmatpush2.msra.mxu0 0.0
    %526 = vmatprep.subr.mxu0 0.0
    %527 = vmatpush2.msra.mxu0 0.0
    %528 = vmatprep.subr.mxu0 0.0
    %529 = vmatpush2.msra.mxu0 0.0
    %530 = vmatprep.subr.mxu0 0.0
    %531 = vmatpush2.msra.mxu0 0.0
    %532 = vmatprep.subr.mxu0 0.0
    %533 = vmatpush2.msra.mxu0 0.0
    %534 = vmatprep.mubr.f32.mxu0 0.0
    %535 = vmatmul.mubr.f32.gmra.mxu0 %v468
    %v536 = vpop.f32.mrf.mxu0
    %v537 = vadd.f32 0.0, %v536
    %v538 = vpop.f32.mrf.mxu0
    %539 = vdwg.mxu0
    %s540 = scalar_lea.vmem [#allocation3], 1
    %v541 = vld [vmem:[%s540] sm:$0x1]
    %543 = vset.pattern.permute.xlu0 0
    %544 = vperm.xlu0 %543, %v537
    %v545 = vpop.permute.xlu0 %544
    %v548 = vlaneseq
    %v549 = vshrl.u32 %v548, 7
    %v550 = vsub.s32 0, %v549
    %v551 = vrot.slane %v541, %v550
    %v553 = vadd.f32 %v545, %v551
    %v554 = vtanh.pop %v553
    %s555 = scalar_lea.vmem %s1, 8
    %v556 = vld [vmem:[%s555] sm:$0xff]
    %v557 = vadd.f32 %v556, %v554
    %v558 = vsel %vm376, %v557, -inf
    %559 = vmax.xlane.f32.xlu0 %v558
    %v560 = vpop.xlane.xlu0 %559
    %v561 = vsub.f32 %v557, %v560
    %v562 = vmul.f32 %v561, 1.442695
    %v563 = vpow.pop %v562
    %v565 = vsel %vm376, %v563, 0
    %567 = vmatprep.subr.mxu0 0.0
    %568 = vmatpush1.msra.mxu0 0.0
    %569 = vmatprep.subr.mxu0 0.0
    %570 = vmatpush1.msra.mxu0 0.0
    %571 = vmatprep.subr.mxu0 0.0
    %572 = vmatpush1.msra.mxu0 0.0
    %573 = vmatprep.subr.mxu0 0.0
    %574 = vmatpush1.msra.mxu0 0.0
    %575 = vmatprep.subr.mxu0 0.0
    %576 = vmatpush1.msra.mxu0 0.0
    %577 = vmatprep.subr.mxu0 0.0
    %578 = vmatpush1.msra.mxu0 0.0
    %579 = vmatprep.subr.mxu0 0.0
    %580 = vmatpush1.msra.mxu0 0.0
    %581 = vmatprep.subr.mxu0 0.0
    %582 = vmatpush1.msra.mxu0 0.0
    %583 = vmatprep.subr.mxu0 0.0
    %584 = vmatpush1.msra.mxu0 0.0
    %585 = vmatprep.subr.mxu0 0.0
    %586 = vmatpush1.msra.mxu0 0.0
    %587 = vmatprep.subr.mxu0 0.0
    %588 = vmatpush1.msra.mxu0 0.0
    %589 = vmatprep.subr.mxu0 0.0
    %590 = vmatpush1.msra.mxu0 0.0
    %591 = vmatprep.subr.mxu0 0.0
    %592 = vmatpush1.msra.mxu0 0.0
    %593 = vmatprep.subr.mxu0 0.0
    %594 = vmatpush1.msra.mxu0 0.0
    %595 = vmatprep.subr.mxu0 0.0
    %596 = vmatpush1.msra.mxu0 0.0
    %597 = vmatprep.subr.mxu0 0.0
    %598 = vmatpush1.msra.mxu0 %v463
    %599 = vmatprep.subr.mxu0 0.0
    %600 = vmatpush2.msra.mxu0 0.0
    %601 = vmatprep.subr.mxu0 0.0
    %602 = vmatpush2.msra.mxu0 0.0
    %603 = vmatprep.subr.mxu0 0.0
    %604 = vmatpush2.msra.mxu0 0.0
    %605 = vmatprep.subr.mxu0 0.0
    %606 = vmatpush2.msra.mxu0 0.0
    %607 = vmatprep.subr.mxu0 0.0
    %608 = vmatpush2.msra.mxu0 0.0
    %609 = vmatprep.subr.mxu0 0.0
    %610 = vmatpush2.msra.mxu0 0.0
    %611 = vmatprep.subr.mxu0 0.0
    %612 = vmatpush2.msra.mxu0 0.0
    %613 = vmatprep.subr.mxu0 0.0
    %614 = vmatpush2.msra.mxu0 0.0
    %615 = vmatprep.subr.mxu0 0.0
    %616 = vmatpush2.msra.mxu0 0.0
    %617 = vmatprep.subr.mxu0 0.0
    %618 = vmatpush2.msra.mxu0 0.0
    %619 = vmatprep.subr.mxu0 0.0
    %620 = vmatpush2.msra.mxu0 0.0
    %621 = vmatprep.subr.mxu0 0.0
    %622 = vmatpush2.msra.mxu0 0.0
    %623 = vmatprep.subr.mxu0 0.0
    %624 = vmatpush2.msra.mxu0 0.0
    %625 = vmatprep.subr.mxu0 0.0
    %626 = vmatpush2.msra.mxu0 0.0
    %627 = vmatprep.subr.mxu0 0.0
    %628 = vmatpush2.msra.mxu0 0.0
    %629 = vmatprep.subr.mxu0 0.0
    %630 = vmatpush2.msra.mxu0 0.0
    %631 = vmatprep.mubr.f32.mxu0 0.0
    %632 = vmatmul.mubr.f32.gmra.mxu0 %v565
    %v633 = vpop.f32.mrf.mxu0
    %v634 = vadd.f32 0.0, %v633
    %v635 = vpop.f32.mrf.mxu0
    %636 = vdwg.mxu0
    %v637 = vsel %vm376, %v563, 0.0
    %638 = vadd.xlane.f32.xlu0 %v637
    %v639 = vpop.xlane.xlu0 %638
    %v640 = vrcp.pop %v639
    %v641 = vmul.f32 1.0, %v640
    %v642 = vmul.f32 %v634, %v641
    %644 = vrot.lane.b32.xlu0 %v642, 32
    %v645 = vpop.permute.xlu0 %644
    %v647 = vsel %vm286, %v461, %v645
    %vm648 = vcmask 523264
    %649 = vst.msk [vmem:[#allocation7] sm:$0xff] %vm648, %v647
    // Predicated region
    $region30: #{tpu_custom_call.1} parent=1 // pred_check
      _
    $region31: #{tpu_custom_call.1} parent=1 // pred_check_branch
      %651 = sbr.rel (0) target = $region33
    $region32: #{tpu_custom_call.1} parent=1 // pred_region
      %s653 = ssub.s32 128, 128
      %654 = vsyncadd [#allocation6], %s653
      %s656 = sshll.u32 [#allocation7], 4
      %s657 = int_to_ptr.vmem [resolvable:$true] %s656
      %659 = dma.vmem_to_hbm [thread:$0]  %s657, 128, %s5, [#allocation6]
    $region33: #{tpu_custom_call.1} parent=1 // pred_fallthru
      _
    // Predicated region
    $region34: #{tpu_custom_call.1} parent=1 // pred_check
      _
    $region35: #{tpu_custom_call.1} parent=1 // pred_check_branch
      %661 = sbr.rel (0) target = $region37
    $region36: #{tpu_custom_call.1} parent=1 // pred_region
      %662 = dma.done [#allocation6], 128
    $region37: #{tpu_custom_call.1} parent=1 // pred_fallthru
      _
    %663 = vsyncpa [#allocation5], 1
    %664 = vsyncpa [#allocation6], 1

</llo_original>
